<compile_context>
chip_gen: v5e
topology: v5e:2x2
jax: 0.10.0
libtpu: 0.0.40
codegen_flags: <defaults>
</compile_context>

<pallas_src>
import functools
import math

import jax
import jax.numpy as jnp
from jax.experimental import pallas as pl
from jax.experimental.pallas import tpu as pltpu  # noqa: F401 (TPU backend)

NHEAD = 4
LN_EPS = 1e-5
_NEG_INF = -1e30


def _layernorm(x, gamma, beta):
    mean = jnp.mean(x, axis=-1, keepdims=True)
    var = jnp.mean((x - mean) ** 2, axis=-1, keepdims=True)
    return (x - mean) * jax.lax.rsqrt(var + LN_EPS) * gamma + beta


def _cross_modal_kernel(
    xq_ref, xm_ref,                       # (B*Lq, Din), (B*Lm, D) activations
    wa_ref, wq_ref, wkv_ref, wo_ref,      # projection weights
    w1_ref, w2_ref,                       # feed-forward weights
    vec_ref,                              # (8, D): ba, bq, bo, g1, be1, b2, g2, be2
    bkv_ref, b1_ref,                      # (1, 2D), (1, F)
    o_ref,                                # (B*Lq, D)
    *, nhead, head_dim, batch, d_model,
):
    x = xq_ref[...]                       # (B*Lq, Din)
    mem = xm_ref[...]                     # (B*Lm, D)

    ba = vec_ref[0:1, :]
    bq = vec_ref[1:2, :]
    bo = vec_ref[2:3, :]
    g1 = vec_ref[3:4, :]
    be1 = vec_ref[4:5, :]
    b2 = vec_ref[5:6, :]
    g2 = vec_ref[6:7, :]
    be2 = vec_ref[7:8, :]

    # affine_matrix: Linear(input_dim, d_model) over all B*Lq rows at once.
    q = jnp.dot(x, wa_ref[...], preferred_element_type=jnp.float32) + ba

    # Q projection (1/sqrt(head_dim) pre-folded into wq/bq) + fused K|V projection.
    Q = jnp.dot(q, wq_ref[...], preferred_element_type=jnp.float32) + bq
    KV = jnp.dot(mem, wkv_ref[...], preferred_element_type=jnp.float32) + bkv_ref[...]
    K = KV[:, :d_model]
    V = KV[:, d_model:]

    nq = x.shape[0]
    nk = mem.shape[0]

    # Rows are (seq, batch) interleaved (batch index = row % B): a query row
    # may only attend to memory rows of the same batch element.
    qb = jax.lax.broadcasted_iota(jnp.int32, (nq, nk), 0) % batch
    kb = jax.lax.broadcasted_iota(jnp.int32, (nq, nk), 1) % batch
    same_batch = qb == kb

    lane = jax.lax.broadcasted_iota(jnp.int32, (1, d_model), 1)

    # Multi-head attention via lane masks: each head's contribution is a pair
    # of full-width MXU matmuls; summing the masked P @ V terms reproduces the
    # concatenated multi-head output without any lane slicing / concatenate.
    nt_dims = (((1,), (1,)), ((), ()))    # contract last dim of both (A @ B.T)
    attn = jnp.zeros((nq, d_model), jnp.float32)
    for h in range(nhead):
        hmask = ((lane >= h * head_dim) & (lane < (h + 1) * head_dim)).astype(jnp.float32)
        s = jax.lax.dot_general(Q * hmask, K, nt_dims,
                                preferred_element_type=jnp.float32)       # (nq, nk)
        s = jnp.where(same_batch, s, _NEG_INF)
        s = s - jnp.max(s, axis=-1, keepdims=True)
        p = jnp.exp(s)
        p = p * pl.reciprocal(jnp.sum(p, axis=-1, keepdims=True), approx=True)
        attn = attn + jnp.dot(p, V * hmask, preferred_element_type=jnp.float32)

    attn = jnp.dot(attn, wo_ref[...], preferred_element_type=jnp.float32) + bo

    # TODO(synk): dropout layers are identity here (eval/deterministic mode).
    t = _layernorm(q + attn, g1, be1)

    f = jnp.maximum(
        jnp.dot(t, w1_ref[...], preferred_element_type=jnp.float32) + b1_ref[...], 0.0)
    f = jnp.dot(f, w2_ref[...], preferred_element_type=jnp.float32) + b2

    o_ref[...] = _layernorm(t + f, g2, be2).astype(o_ref.dtype)


def prepare_params(params):
    """One-time constant folding / packing of the module parameters."""
    d_model = params["wq"].shape[0]
    head_dim = d_model // NHEAD
    scale = 1.0 / math.sqrt(head_dim)
    return {
        "wa": params["wa"],
        "wq": params["wq"] * scale,                                   # scale folded
        "wkv": jnp.concatenate([params["wk"], params["wv"]], axis=1),  # fused K|V
        "wo": params["wo"],
        "w1": params["w1"],
        "w2": params["w2"],
        "vecs": jnp.concatenate(
            [params["ba"], params["bq"] * scale, params["bo"], params["g1"],
             params["be1"], params["b2"], params["g2"], params["be2"]], axis=0),
        "bkv": jnp.concatenate([params["bk"], params["bv"]], axis=1),
        "b1": params["b1"],
    }


def cross_modal_relation_att(query, memory, prepped):
    """query: (Lq, B, input_dim), memory: (Lm, B, d_model) -> (Lq, B, d_model)."""
    Lq, B, Din = query.shape
    Lm, Bm, D = memory.shape
    assert Bm == B
    head_dim = D // NHEAD

    # Free row-major merges (no transpose, no extra HBM pass).
    xq = query.reshape(Lq * B, Din)
    xm = memory.reshape(Lm * B, D)

    kernel = functools.partial(
        _cross_modal_kernel, nhead=NHEAD, head_dim=head_dim, batch=B, d_model=D)

    # Single invocation, no grid: every operand (< 64 KiB total) lives whole in
    # VMEM with default full-array BlockSpecs.
    out = pl.pallas_call(
        kernel,
        out_shape=jax.ShapeDtypeStruct((Lq * B, D), jnp.float32),
    )(xq, xm, prepped["wa"], prepped["wq"], prepped["wkv"], prepped["wo"],
      prepped["w1"], prepped["w2"], prepped["vecs"], prepped["bkv"], prepped["b1"])

    return out.reshape(Lq, B, D)


def _reference(query, memory, params):
    """Pure-JAX reference of the same forward pass (for verification)."""
    q = jnp.einsum("lbi,io->lbo", query, params["wa"]) + params["ba"][0]
    Q = jnp.einsum("lbd,de->lbe", q, params["wq"]) + params["bq"][0]
    K = jnp.einsum("lbd,de->lbe", memory, params["wk"]) + params["bk"][0]
    V = jnp.einsum("lbd,de->lbe", memory, params["wv"]) + params["bv"][0]
    Lq, B, D = Q.shape
    Lm = K.shape[0]
    Dh = D // NHEAD
    Qh = Q.reshape(Lq, B, NHEAD, Dh) / math.sqrt(Dh)
    Kh = K.reshape(Lm, B, NHEAD, Dh)
    Vh = V.reshape(Lm, B, NHEAD, Dh)
    s = jnp.einsum("qbhd,kbhd->bhqk", Qh, Kh)
    p = jax.nn.softmax(s, axis=-1)
    a = jnp.einsum("bhqk,kbhd->qbhd", p, Vh).reshape(Lq, B, D)
    a = jnp.einsum("lbd,de->lbe", a, params["wo"]) + params["bo"][0]

    def ln(x, g, b):
        m = jnp.mean(x, -1, keepdims=True)
        v = jnp.mean((x - m) ** 2, -1, keepdims=True)
        return (x - m) * jax.lax.rsqrt(v + LN_EPS) * g[0] + b[0]

    t = ln(q + a, params["g1"], params["be1"])
    f = jnp.maximum(jnp.einsum("lbd,df->lbf", t, params["w1"]) + params["b1"][0], 0.0)
    f = jnp.einsum("lbf,fd->lbd", f, params["w2"]) + params["b2"][0]
    return ln(t + f, params["g2"], params["be2"])


def make_params(key, input_dim, d_model, ff_dim):
    ks = jax.random.split(key, 8)
    n = lambda k, s: (0.02 * jax.random.normal(k, s, jnp.float32))
    params = {
        "wa": n(ks[0], (input_dim, d_model)), "ba": jnp.zeros((1, d_model), jnp.float32),
        "wq": n(ks[1], (d_model, d_model)),   "bq": jnp.zeros((1, d_model), jnp.float32),
        "wk": n(ks[2], (d_model, d_model)),   "bk": jnp.zeros((1, d_model), jnp.float32),
        "wv": n(ks[3], (d_model, d_model)),   "bv": jnp.zeros((1, d_model), jnp.float32),
        "wo": n(ks[4], (d_model, d_model)),   "bo": jnp.zeros((1, d_model), jnp.float32),
        "g1": jnp.ones((1, d_model), jnp.float32), "be1": jnp.zeros((1, d_model), jnp.float32),
        "w1": n(ks[5], (d_model, ff_dim)),    "b1": 0.01 * jnp.ones((1, ff_dim), jnp.float32),
        "w2": n(ks[6], (ff_dim, d_model)),    "b2": 0.01 * jnp.ones((1, d_model), jnp.float32),
        "g2": jnp.ones((1, d_model), jnp.float32), "be2": jnp.zeros((1, d_model), jnp.float32),
    }
    return params


if __name__ == "__main__":
    # shapes consistent with the module's forward:
    #   query_feature: (Lq, B, input_dim), memory_feature: (Lm, B, d_model)
    Lq, Lm, B = 8, 8, 2
    INPUT_DIM, D_MODEL, FF_DIM = 48, 32, 64

    key = jax.random.PRNGKey(0)
    kq, km, kp = jax.random.split(key, 3)
    query = jax.random.normal(kq, (Lq, B, INPUT_DIM), jnp.float32)
    memory = jax.random.normal(km, (Lm, B, D_MODEL), jnp.float32)
    params = make_params(kp, INPUT_DIM, D_MODEL, FF_DIM)
    prepped = prepare_params(params)          # one-time constant fold / packing

    out = cross_modal_relation_att(query, memory, prepped)
    out = jax.block_until_ready(out)

    ref = _reference(query, memory, params)
    assert out.shape == (Lq, B, D_MODEL)
    # approx reciprocal in the softmax => slightly looser tolerance than exact f32
    assert jnp.allclose(out, ref, atol=2e-3, rtol=2e-3), "mismatch vs JAX reference"

    print("KERNEL_OK")
</pallas_src>

<mosaic_0001>
module attributes {stable_mosaic.version = 11 : i64} {
  func.func @_cross_modal_kernel(%arg0: memref<16x48xf32, #tpu.memory_space<vmem>>, %arg1: memref<16x32xf32, #tpu.memory_space<vmem>>, %arg2: memref<48x32xf32, #tpu.memory_space<vmem>>, %arg3: memref<32x32xf32, #tpu.memory_space<vmem>>, %arg4: memref<32x64xf32, #tpu.memory_space<vmem>>, %arg5: memref<32x32xf32, #tpu.memory_space<vmem>>, %arg6: memref<32x64xf32, #tpu.memory_space<vmem>>, %arg7: memref<64x32xf32, #tpu.memory_space<vmem>>, %arg8: memref<8x32xf32, #tpu.memory_space<vmem>>, %arg9: memref<1x64xf32, #tpu.memory_space<vmem>>, %arg10: memref<1x64xf32, #tpu.memory_space<vmem>>, %arg11: memref<16x32xf32, #tpu.memory_space<vmem>>) attributes {dimension_semantics = [], scalar_prefetch = 0 : i64, scratch_operands = 0 : i64, tpu.core_type = #tpu.core_type<tc>} {
    %c0 = arith.constant 0 : index
    %c0_0 = arith.constant 0 : index
    %0 = vector.load %arg0[%c0, %c0_0] : memref<16x48xf32, #tpu.memory_space<vmem>>, vector<16x48xf32>
    %c0_1 = arith.constant 0 : index
    %c0_2 = arith.constant 0 : index
    %1 = vector.load %arg1[%c0_1, %c0_2] : memref<16x32xf32, #tpu.memory_space<vmem>>, vector<16x32xf32>
    %c0_3 = arith.constant 0 : index
    %c0_4 = arith.constant 0 : index
    %2 = vector.load %arg8[%c0_3, %c0_4] : memref<8x32xf32, #tpu.memory_space<vmem>>, vector<1x32xf32>
    %c1 = arith.constant 1 : index
    %c0_5 = arith.constant 0 : index
    %3 = vector.load %arg8[%c1, %c0_5] : memref<8x32xf32, #tpu.memory_space<vmem>>, vector<1x32xf32>
    %c2 = arith.constant 2 : index
    %c0_6 = arith.constant 0 : index
    %4 = vector.load %arg8[%c2, %c0_6] : memref<8x32xf32, #tpu.memory_space<vmem>>, vector<1x32xf32>
    %c3 = arith.constant 3 : index
    %c0_7 = arith.constant 0 : index
    %5 = vector.load %arg8[%c3, %c0_7] : memref<8x32xf32, #tpu.memory_space<vmem>>, vector<1x32xf32>
    %c4 = arith.constant 4 : index
    %c0_8 = arith.constant 0 : index
    %6 = vector.load %arg8[%c4, %c0_8] : memref<8x32xf32, #tpu.memory_space<vmem>>, vector<1x32xf32>
    %c5 = arith.constant 5 : index
    %c0_9 = arith.constant 0 : index
    %7 = vector.load %arg8[%c5, %c0_9] : memref<8x32xf32, #tpu.memory_space<vmem>>, vector<1x32xf32>
    %c6 = arith.constant 6 : index
    %c0_10 = arith.constant 0 : index
    %8 = vector.load %arg8[%c6, %c0_10] : memref<8x32xf32, #tpu.memory_space<vmem>>, vector<1x32xf32>
    %c7 = arith.constant 7 : index
    %c0_11 = arith.constant 0 : index
    %9 = vector.load %arg8[%c7, %c0_11] : memref<8x32xf32, #tpu.memory_space<vmem>>, vector<1x32xf32>
    %c0_12 = arith.constant 0 : index
    %c0_13 = arith.constant 0 : index
    %10 = vector.load %arg2[%c0_12, %c0_13] : memref<48x32xf32, #tpu.memory_space<vmem>>, vector<48x32xf32>
    %cst = arith.constant dense<0.000000e+00> : vector<16x32xf32>
    %11 = tpu.matmul %0, %10, %cst {dimension_numbers = #tpu.dot_dimension_numbers<[1], [0], [0], [1], [0, 0, 1, 1], [], []>} : vector<16x48xf32>, vector<48x32xf32>, vector<16x32xf32> -> vector<16x32xf32>
    %12 = vector.broadcast %2 : vector<1x32xf32> to vector<16x32xf32>
    %13 = arith.addf %11, %12 : vector<16x32xf32>
    %c0_14 = arith.constant 0 : index
    %c0_15 = arith.constant 0 : index
    %14 = vector.load %arg3[%c0_14, %c0_15] : memref<32x32xf32, #tpu.memory_space<vmem>>, vector<32x32xf32>
    %cst_16 = arith.constant dense<0.000000e+00> : vector<16x32xf32>
    %15 = tpu.matmul %13, %14, %cst_16 {dimension_numbers = #tpu.dot_dimension_numbers<[1], [0], [0], [1], [0, 0, 1, 1], [], []>} : vector<16x32xf32>, vector<32x32xf32>, vector<16x32xf32> -> vector<16x32xf32>
    %16 = vector.broadcast %3 : vector<1x32xf32> to vector<16x32xf32>
    %17 = arith.addf %15, %16 : vector<16x32xf32>
    %c0_17 = arith.constant 0 : index
    %c0_18 = arith.constant 0 : index
    %18 = vector.load %arg4[%c0_17, %c0_18] : memref<32x64xf32, #tpu.memory_space<vmem>>, vector<32x64xf32>
    %cst_19 = arith.constant dense<0.000000e+00> : vector<16x64xf32>
    %19 = tpu.matmul %1, %18, %cst_19 {dimension_numbers = #tpu.dot_dimension_numbers<[1], [0], [0], [1], [0, 0, 1, 1], [], []>} : vector<16x32xf32>, vector<32x64xf32>, vector<16x64xf32> -> vector<16x64xf32>
    %c0_20 = arith.constant 0 : index
    %c0_21 = arith.constant 0 : index
    %20 = vector.load %arg9[%c0_20, %c0_21] : memref<1x64xf32, #tpu.memory_space<vmem>>, vector<1x64xf32>
    %21 = vector.broadcast %20 : vector<1x64xf32> to vector<16x64xf32>
    %22 = arith.addf %19, %21 : vector<16x64xf32>
    %23 = vector.extract_strided_slice %22 {offsets = [0, 0], sizes = [16, 32], strides = [1, 1]} : vector<16x64xf32> to vector<16x32xf32>
    %24 = vector.extract_strided_slice %22 {offsets = [0, 32], sizes = [16, 32], strides = [1, 1]} : vector<16x64xf32> to vector<16x32xf32>
    %25 = tpu.iota {dimensions = array<i32: 0>} : vector<16x16xi32>
    %c2_i32 = arith.constant 2 : i32
    %c0_i32 = arith.constant 0 : i32
    %26 = arith.cmpi eq, %c2_i32, %c0_i32 : i32
    %c1_i32 = arith.constant 1 : i32
    %27 = arith.select %26, %c1_i32, %c2_i32 : i32
    %28 = vector.broadcast %27 : i32 to vector<16x16xi32>
    %29 = arith.remsi %25, %28 : vector<16x16xi32>
    %c0_i32_22 = arith.constant 0 : i32
    %30 = vector.broadcast %c0_i32_22 : i32 to vector<16x16xi32>
    %31 = arith.cmpi ne, %29, %30 : vector<16x16xi32>
    %c0_i32_23 = arith.constant 0 : i32
    %32 = vector.broadcast %c0_i32_23 : i32 to vector<16x16xi32>
    %33 = arith.cmpi slt, %29, %32 : vector<16x16xi32>
    %c0_i32_24 = arith.constant 0 : i32
    %34 = arith.cmpi slt, %27, %c0_i32_24 : i32
    %35 = vector.broadcast %34 : i1 to vector<16x16xi1>
    %36 = vector.broadcast %35 : vector<16x16xi1> to vector<16x16xi1>
    %37 = arith.xori %33, %36 : vector<16x16xi1>
    %38 = arith.andi %37, %31 : vector<16x16xi1>
    %39 = vector.broadcast %27 : i32 to vector<16x16xi32>
    %40 = arith.addi %29, %39 : vector<16x16xi32>
    %41 = arith.select %38, %40, %29 : vector<16x16xi1>, vector<16x16xi32>
    %42 = tpu.iota {dimensions = array<i32: 1>} : vector<16x16xi32>
    %c2_i32_25 = arith.constant 2 : i32
    %c0_i32_26 = arith.constant 0 : i32
    %43 = arith.cmpi eq, %c2_i32_25, %c0_i32_26 : i32
    %c1_i32_27 = arith.constant 1 : i32
    %44 = arith.select %43, %c1_i32_27, %c2_i32_25 : i32
    %45 = vector.broadcast %44 : i32 to vector<16x16xi32>
    %46 = arith.remsi %42, %45 : vector<16x16xi32>
    %c0_i32_28 = arith.constant 0 : i32
    %47 = vector.broadcast %c0_i32_28 : i32 to vector<16x16xi32>
    %48 = arith.cmpi ne, %46, %47 : vector<16x16xi32>
    %c0_i32_29 = arith.constant 0 : i32
    %49 = vector.broadcast %c0_i32_29 : i32 to vector<16x16xi32>
    %50 = arith.cmpi slt, %46, %49 : vector<16x16xi32>
    %c0_i32_30 = arith.constant 0 : i32
    %51 = arith.cmpi slt, %44, %c0_i32_30 : i32
    %52 = vector.broadcast %51 : i1 to vector<16x16xi1>
    %53 = vector.broadcast %52 : vector<16x16xi1> to vector<16x16xi1>
    %54 = arith.xori %50, %53 : vector<16x16xi1>
    %55 = arith.andi %54, %48 : vector<16x16xi1>
    %56 = vector.broadcast %44 : i32 to vector<16x16xi32>
    %57 = arith.addi %46, %56 : vector<16x16xi32>
    %58 = arith.select %55, %57, %46 : vector<16x16xi1>, vector<16x16xi32>
    %59 = arith.cmpi eq, %41, %58 : vector<16x16xi32>
    %60 = tpu.iota {dimensions = array<i32: 1>} : vector<1x32xi32>
    %cst_31 = arith.constant 0.000000e+00 : f32
    %61 = vector.broadcast %cst_31 : f32 to vector<16x32xf32>
    %c0_i32_32 = arith.constant 0 : i32
    %62 = vector.broadcast %c0_i32_32 : i32 to vector<1x32xi32>
    %63 = arith.cmpi sge, %60, %62 : vector<1x32xi32>
    %c8_i32 = arith.constant 8 : i32
    %64 = vector.broadcast %c8_i32 : i32 to vector<1x32xi32>
    %65 = arith.cmpi slt, %60, %64 : vector<1x32xi32>
    %66 = arith.andi %63, %65 : vector<1x32xi1>
    %67 = arith.extui %66 : vector<1x32xi1> to vector<1x32xi32>
    %68 = arith.sitofp %67 : vector<1x32xi32> to vector<1x32xf32>
    %69 = vector.broadcast %68 : vector<1x32xf32> to vector<16x32xf32>
    %70 = arith.mulf %17, %69 : vector<16x32xf32>
    %cst_33 = arith.constant dense<0.000000e+00> : vector<16x16xf32>
    %71 = tpu.matmul %70, %23, %cst_33 {dimension_numbers = #tpu.dot_dimension_numbers<[1], [1], [0], [0], [0, 0, 1, 0], [], []>} : vector<16x32xf32>, vector<16x32xf32>, vector<16x16xf32> -> vector<16x16xf32>
    %cst_34 = arith.constant -1.000000e+30 : f32
    %72 = vector.broadcast %cst_34 : f32 to vector<16x16xf32>
    %73 = arith.select %59, %71, %72 : vector<16x16xi1>, vector<16x16xf32>
    %cst_35 = arith.constant dense<0xFF800000> : vector<16xf32>
    %74 = vector.multi_reduction <maximumf>, %73, %cst_35 [1] : vector<16x16xf32> to vector<16xf32>
    %75 = vector.shape_cast %74 : vector<16xf32> to vector<16x1xf32>
    %76 = vector.broadcast %75 : vector<16x1xf32> to vector<16x16xf32>
    %77 = arith.subf %73, %76 : vector<16x16xf32>
    %78 = math.exp %77 : vector<16x16xf32>
    %cst_36 = arith.constant dense<0.000000e+00> : vector<16xf32>
    %79 = vector.multi_reduction <add>, %78, %cst_36 [1] : vector<16x16xf32> to vector<16xf32>
    %80 = vector.shape_cast %79 : vector<16xf32> to vector<16x1xf32>
    %81 = tpu.reciprocal %80 {approx = true} : vector<16x1xf32> -> vector<16x1xf32>
    %82 = vector.broadcast %81 : vector<16x1xf32> to vector<16x16xf32>
    %83 = arith.mulf %78, %82 : vector<16x16xf32>
    %84 = vector.broadcast %68 : vector<1x32xf32> to vector<16x32xf32>
    %85 = arith.mulf %24, %84 : vector<16x32xf32>
    %cst_37 = arith.constant dense<0.000000e+00> : vector<16x32xf32>
    %86 = tpu.matmul %83, %85, %cst_37 {dimension_numbers = #tpu.dot_dimension_numbers<[1], [0], [0], [1], [0, 0, 1, 1], [], []>} : vector<16x16xf32>, vector<16x32xf32>, vector<16x32xf32> -> vector<16x32xf32>
    %87 = arith.addf %61, %86 : vector<16x32xf32>
    %c8_i32_38 = arith.constant 8 : i32
    %88 = vector.broadcast %c8_i32_38 : i32 to vector<1x32xi32>
    %89 = arith.cmpi sge, %60, %88 : vector<1x32xi32>
    %c16_i32 = arith.constant 16 : i32
    %90 = vector.broadcast %c16_i32 : i32 to vector<1x32xi32>
    %91 = arith.cmpi slt, %60, %90 : vector<1x32xi32>
    %92 = arith.andi %89, %91 : vector<1x32xi1>
    %93 = arith.extui %92 : vector<1x32xi1> to vector<1x32xi32>
    %94 = arith.sitofp %93 : vector<1x32xi32> to vector<1x32xf32>
    %95 = vector.broadcast %94 : vector<1x32xf32> to vector<16x32xf32>
    %96 = arith.mulf %17, %95 : vector<16x32xf32>
    %cst_39 = arith.constant dense<0.000000e+00> : vector<16x16xf32>
    %97 = tpu.matmul %96, %23, %cst_39 {dimension_numbers = #tpu.dot_dimension_numbers<[1], [1], [0], [0], [0, 0, 1, 0], [], []>} : vector<16x32xf32>, vector<16x32xf32>, vector<16x16xf32> -> vector<16x16xf32>
    %cst_40 = arith.constant -1.000000e+30 : f32
    %98 = vector.broadcast %cst_40 : f32 to vector<16x16xf32>
    %99 = arith.select %59, %97, %98 : vector<16x16xi1>, vector<16x16xf32>
    %cst_41 = arith.constant dense<0xFF800000> : vector<16xf32>
    %100 = vector.multi_reduction <maximumf>, %99, %cst_41 [1] : vector<16x16xf32> to vector<16xf32>
    %101 = vector.shape_cast %100 : vector<16xf32> to vector<16x1xf32>
    %102 = vector.broadcast %101 : vector<16x1xf32> to vector<16x16xf32>
    %103 = arith.subf %99, %102 : vector<16x16xf32>
    %104 = math.exp %103 : vector<16x16xf32>
    %cst_42 = arith.constant dense<0.000000e+00> : vector<16xf32>
    %105 = vector.multi_reduction <add>, %104, %cst_42 [1] : vector<16x16xf32> to vector<16xf32>
    %106 = vector.shape_cast %105 : vector<16xf32> to vector<16x1xf32>
    %107 = tpu.reciprocal %106 {approx = true} : vector<16x1xf32> -> vector<16x1xf32>
    %108 = vector.broadcast %107 : vector<16x1xf32> to vector<16x16xf32>
    %109 = arith.mulf %104, %108 : vector<16x16xf32>
    %110 = vector.broadcast %94 : vector<1x32xf32> to vector<16x32xf32>
    %111 = arith.mulf %24, %110 : vector<16x32xf32>
    %cst_43 = arith.constant dense<0.000000e+00> : vector<16x32xf32>
    %112 = tpu.matmul %109, %111, %cst_43 {dimension_numbers = #tpu.dot_dimension_numbers<[1], [0], [0], [1], [0, 0, 1, 1], [], []>} : vector<16x16xf32>, vector<16x32xf32>, vector<16x32xf32> -> vector<16x32xf32>
    %113 = arith.addf %87, %112 : vector<16x32xf32>
    %c16_i32_44 = arith.constant 16 : i32
    %114 = vector.broadcast %c16_i32_44 : i32 to vector<1x32xi32>
    %115 = arith.cmpi sge, %60, %114 : vector<1x32xi32>
    %c24_i32 = arith.constant 24 : i32
    %116 = vector.broadcast %c24_i32 : i32 to vector<1x32xi32>
    %117 = arith.cmpi slt, %60, %116 : vector<1x32xi32>
    %118 = arith.andi %115, %117 : vector<1x32xi1>
    %119 = arith.extui %118 : vector<1x32xi1> to vector<1x32xi32>
    %120 = arith.sitofp %119 : vector<1x32xi32> to vector<1x32xf32>
    %121 = vector.broadcast %120 : vector<1x32xf32> to vector<16x32xf32>
    %122 = arith.mulf %17, %121 : vector<16x32xf32>
    %cst_45 = arith.constant dense<0.000000e+00> : vector<16x16xf32>
    %123 = tpu.matmul %122, %23, %cst_45 {dimension_numbers = #tpu.dot_dimension_numbers<[1], [1], [0], [0], [0, 0, 1, 0], [], []>} : vector<16x32xf32>, vector<16x32xf32>, vector<16x16xf32> -> vector<16x16xf32>
    %cst_46 = arith.constant -1.000000e+30 : f32
    %124 = vector.broadcast %cst_46 : f32 to vector<16x16xf32>
    %125 = arith.select %59, %123, %124 : vector<16x16xi1>, vector<16x16xf32>
    %cst_47 = arith.constant dense<0xFF800000> : vector<16xf32>
    %126 = vector.multi_reduction <maximumf>, %125, %cst_47 [1] : vector<16x16xf32> to vector<16xf32>
    %127 = vector.shape_cast %126 : vector<16xf32> to vector<16x1xf32>
    %128 = vector.broadcast %127 : vector<16x1xf32> to vector<16x16xf32>
    %129 = arith.subf %125, %128 : vector<16x16xf32>
    %130 = math.exp %129 : vector<16x16xf32>
    %cst_48 = arith.constant dense<0.000000e+00> : vector<16xf32>
    %131 = vector.multi_reduction <add>, %130, %cst_48 [1] : vector<16x16xf32> to vector<16xf32>
    %132 = vector.shape_cast %131 : vector<16xf32> to vector<16x1xf32>
    %133 = tpu.reciprocal %132 {approx = true} : vector<16x1xf32> -> vector<16x1xf32>
    %134 = vector.broadcast %133 : vector<16x1xf32> to vector<16x16xf32>
    %135 = arith.mulf %130, %134 : vector<16x16xf32>
    %136 = vector.broadcast %120 : vector<1x32xf32> to vector<16x32xf32>
    %137 = arith.mulf %24, %136 : vector<16x32xf32>
    %cst_49 = arith.constant dense<0.000000e+00> : vector<16x32xf32>
    %138 = tpu.matmul %135, %137, %cst_49 {dimension_numbers = #tpu.dot_dimension_numbers<[1], [0], [0], [1], [0, 0, 1, 1], [], []>} : vector<16x16xf32>, vector<16x32xf32>, vector<16x32xf32> -> vector<16x32xf32>
    %139 = arith.addf %113, %138 : vector<16x32xf32>
    %c24_i32_50 = arith.constant 24 : i32
    %140 = vector.broadcast %c24_i32_50 : i32 to vector<1x32xi32>
    %141 = arith.cmpi sge, %60, %140 : vector<1x32xi32>
    %c32_i32 = arith.constant 32 : i32
    %142 = vector.broadcast %c32_i32 : i32 to vector<1x32xi32>
    %143 = arith.cmpi slt, %60, %142 : vector<1x32xi32>
    %144 = arith.andi %141, %143 : vector<1x32xi1>
    %145 = arith.extui %144 : vector<1x32xi1> to vector<1x32xi32>
    %146 = arith.sitofp %145 : vector<1x32xi32> to vector<1x32xf32>
    %147 = vector.broadcast %146 : vector<1x32xf32> to vector<16x32xf32>
    %148 = arith.mulf %17, %147 : vector<16x32xf32>
    %cst_51 = arith.constant dense<0.000000e+00> : vector<16x16xf32>
    %149 = tpu.matmul %148, %23, %cst_51 {dimension_numbers = #tpu.dot_dimension_numbers<[1], [1], [0], [0], [0, 0, 1, 0], [], []>} : vector<16x32xf32>, vector<16x32xf32>, vector<16x16xf32> -> vector<16x16xf32>
    %cst_52 = arith.constant -1.000000e+30 : f32
    %150 = vector.broadcast %cst_52 : f32 to vector<16x16xf32>
    %151 = arith.select %59, %149, %150 : vector<16x16xi1>, vector<16x16xf32>
    %cst_53 = arith.constant dense<0xFF800000> : vector<16xf32>
    %152 = vector.multi_reduction <maximumf>, %151, %cst_53 [1] : vector<16x16xf32> to vector<16xf32>
    %153 = vector.shape_cast %152 : vector<16xf32> to vector<16x1xf32>
    %154 = vector.broadcast %153 : vector<16x1xf32> to vector<16x16xf32>
    %155 = arith.subf %151, %154 : vector<16x16xf32>
    %156 = math.exp %155 : vector<16x16xf32>
    %cst_54 = arith.constant dense<0.000000e+00> : vector<16xf32>
    %157 = vector.multi_reduction <add>, %156, %cst_54 [1] : vector<16x16xf32> to vector<16xf32>
    %158 = vector.shape_cast %157 : vector<16xf32> to vector<16x1xf32>
    %159 = tpu.reciprocal %158 {approx = true} : vector<16x1xf32> -> vector<16x1xf32>
    %160 = vector.broadcast %159 : vector<16x1xf32> to vector<16x16xf32>
    %161 = arith.mulf %156, %160 : vector<16x16xf32>
    %162 = vector.broadcast %146 : vector<1x32xf32> to vector<16x32xf32>
    %163 = arith.mulf %24, %162 : vector<16x32xf32>
    %cst_55 = arith.constant dense<0.000000e+00> : vector<16x32xf32>
    %164 = tpu.matmul %161, %163, %cst_55 {dimension_numbers = #tpu.dot_dimension_numbers<[1], [0], [0], [1], [0, 0, 1, 1], [], []>} : vector<16x16xf32>, vector<16x32xf32>, vector<16x32xf32> -> vector<16x32xf32>
    %165 = arith.addf %139, %164 : vector<16x32xf32>
    %c0_56 = arith.constant 0 : index
    %c0_57 = arith.constant 0 : index
    %166 = vector.load %arg5[%c0_56, %c0_57] : memref<32x32xf32, #tpu.memory_space<vmem>>, vector<32x32xf32>
    %cst_58 = arith.constant dense<0.000000e+00> : vector<16x32xf32>
    %167 = tpu.matmul %165, %166, %cst_58 {dimension_numbers = #tpu.dot_dimension_numbers<[1], [0], [0], [1], [0, 0, 1, 1], [], []>} : vector<16x32xf32>, vector<32x32xf32>, vector<16x32xf32> -> vector<16x32xf32>
    %168 = vector.broadcast %4 : vector<1x32xf32> to vector<16x32xf32>
    %169 = arith.addf %167, %168 : vector<16x32xf32>
    %170 = arith.addf %13, %169 : vector<16x32xf32>
    %cst_59 = arith.constant dense<0.000000e+00> : vector<16xf32>
    %171 = vector.multi_reduction <add>, %170, %cst_59 [1] : vector<16x32xf32> to vector<16xf32>
    %172 = vector.shape_cast %171 : vector<16xf32> to vector<16x1xf32>
    %cst_60 = arith.constant 3.200000e+01 : f32
    %173 = vector.broadcast %cst_60 : f32 to vector<16x1xf32>
    %174 = arith.divf %172, %173 : vector<16x1xf32>
    %175 = vector.broadcast %174 : vector<16x1xf32> to vector<16x32xf32>
    %176 = arith.subf %170, %175 : vector<16x32xf32>
    %177 = arith.mulf %176, %176 : vector<16x32xf32>
    %cst_61 = arith.constant dense<0.000000e+00> : vector<16xf32>
    %178 = vector.multi_reduction <add>, %177, %cst_61 [1] : vector<16x32xf32> to vector<16xf32>
    %179 = vector.shape_cast %178 : vector<16xf32> to vector<16x1xf32>
    %cst_62 = arith.constant 3.200000e+01 : f32
    %180 = vector.broadcast %cst_62 : f32 to vector<16x1xf32>
    %181 = arith.divf %179, %180 : vector<16x1xf32>
    %182 = vector.broadcast %174 : vector<16x1xf32> to vector<16x32xf32>
    %183 = arith.subf %170, %182 : vector<16x32xf32>
    %cst_63 = arith.constant 9.99999974E-6 : f32
    %184 = vector.broadcast %cst_63 : f32 to vector<16x1xf32>
    %185 = arith.addf %181, %184 : vector<16x1xf32>
    %186 = math.rsqrt %185 : vector<16x1xf32>
    %187 = vector.broadcast %186 : vector<16x1xf32> to vector<16x32xf32>
    %188 = arith.mulf %183, %187 : vector<16x32xf32>
    %189 = vector.broadcast %5 : vector<1x32xf32> to vector<16x32xf32>
    %190 = arith.mulf %188, %189 : vector<16x32xf32>
    %191 = vector.broadcast %6 : vector<1x32xf32> to vector<16x32xf32>
    %192 = arith.addf %190, %191 : vector<16x32xf32>
    %c0_64 = arith.constant 0 : index
    %c0_65 = arith.constant 0 : index
    %193 = vector.load %arg6[%c0_64, %c0_65] : memref<32x64xf32, #tpu.memory_space<vmem>>, vector<32x64xf32>
    %cst_66 = arith.constant dense<0.000000e+00> : vector<16x64xf32>
    %194 = tpu.matmul %192, %193, %cst_66 {dimension_numbers = #tpu.dot_dimension_numbers<[1], [0], [0], [1], [0, 0, 1, 1], [], []>} : vector<16x32xf32>, vector<32x64xf32>, vector<16x64xf32> -> vector<16x64xf32>
    %c0_67 = arith.constant 0 : index
    %c0_68 = arith.constant 0 : index
    %195 = vector.load %arg10[%c0_67, %c0_68] : memref<1x64xf32, #tpu.memory_space<vmem>>, vector<1x64xf32>
    %196 = vector.broadcast %195 : vector<1x64xf32> to vector<16x64xf32>
    %197 = arith.addf %194, %196 : vector<16x64xf32>
    %cst_69 = arith.constant 0.000000e+00 : f32
    %198 = vector.broadcast %cst_69 : f32 to vector<16x64xf32>
    %199 = arith.maximumf %197, %198 : vector<16x64xf32>
    %c0_70 = arith.constant 0 : index
    %c0_71 = arith.constant 0 : index
    %200 = vector.load %arg7[%c0_70, %c0_71] : memref<64x32xf32, #tpu.memory_space<vmem>>, vector<64x32xf32>
    %cst_72 = arith.constant dense<0.000000e+00> : vector<16x32xf32>
    %201 = tpu.matmul %199, %200, %cst_72 {dimension_numbers = #tpu.dot_dimension_numbers<[1], [0], [0], [1], [0, 0, 1, 1], [], []>} : vector<16x64xf32>, vector<64x32xf32>, vector<16x32xf32> -> vector<16x32xf32>
    %202 = vector.broadcast %7 : vector<1x32xf32> to vector<16x32xf32>
    %203 = arith.addf %201, %202 : vector<16x32xf32>
    %204 = arith.addf %192, %203 : vector<16x32xf32>
    %cst_73 = arith.constant dense<0.000000e+00> : vector<16xf32>
    %205 = vector.multi_reduction <add>, %204, %cst_73 [1] : vector<16x32xf32> to vector<16xf32>
    %206 = vector.shape_cast %205 : vector<16xf32> to vector<16x1xf32>
    %cst_74 = arith.constant 3.200000e+01 : f32
    %207 = vector.broadcast %cst_74 : f32 to vector<16x1xf32>
    %208 = arith.divf %206, %207 : vector<16x1xf32>
    %209 = vector.broadcast %208 : vector<16x1xf32> to vector<16x32xf32>
    %210 = arith.subf %204, %209 : vector<16x32xf32>
    %211 = arith.mulf %210, %210 : vector<16x32xf32>
    %cst_75 = arith.constant dense<0.000000e+00> : vector<16xf32>
    %212 = vector.multi_reduction <add>, %211, %cst_75 [1] : vector<16x32xf32> to vector<16xf32>
    %213 = vector.shape_cast %212 : vector<16xf32> to vector<16x1xf32>
    %cst_76 = arith.constant 3.200000e+01 : f32
    %214 = vector.broadcast %cst_76 : f32 to vector<16x1xf32>
    %215 = arith.divf %213, %214 : vector<16x1xf32>
    %216 = vector.broadcast %208 : vector<16x1xf32> to vector<16x32xf32>
    %217 = arith.subf %204, %216 : vector<16x32xf32>
    %cst_77 = arith.constant 9.99999974E-6 : f32
    %218 = vector.broadcast %cst_77 : f32 to vector<16x1xf32>
    %219 = arith.addf %215, %218 : vector<16x1xf32>
    %220 = math.rsqrt %219 : vector<16x1xf32>
    %221 = vector.broadcast %220 : vector<16x1xf32> to vector<16x32xf32>
    %222 = arith.mulf %217, %221 : vector<16x32xf32>
    %223 = vector.broadcast %8 : vector<1x32xf32> to vector<16x32xf32>
    %224 = arith.mulf %222, %223 : vector<16x32xf32>
    %225 = vector.broadcast %9 : vector<1x32xf32> to vector<16x32xf32>
    %226 = arith.addf %224, %225 : vector<16x32xf32>
    %c0_78 = arith.constant 0 : index
    %c0_79 = arith.constant 0 : index
    %227 = vector.load %arg11[%c0_78, %c0_79] : memref<16x32xf32, #tpu.memory_space<vmem>>, vector<16x32xf32>
    tpu.vector_store %arg11[%c0_78, %c0_79], %226 {strides = array<i32>} : memref<16x32xf32, #tpu.memory_space<vmem>>, vector<16x32xf32>,
    return
  }
}

</mosaic_0001>

<llo_original>
// kernel: tpu_custom_call.1
$region0: #{tpu_custom_call.1}
  #allocation0 [shape = 'u32[]', space=smem, size = 0x4, offset = 0x4, fixed_abs, tag = 'smem constant byte address 0x4 - core index']
  #allocation1 [shape = 'u32[72,128]{1,0:T(1,128)}', space=vmem, size = 0x9000, scoped, tag = 'internal scratch']
  %s0 = inlined_call_operand.vmem [shape: f32[16,48], index: 0, kind: input, shape index: {}]
  %s1 = inlined_call_operand.hbm [shape: f32[16,32], index: 1, kind: input, shape index: {}]
  %s2 = inlined_call_operand.vmem [shape: f32[48,32], index: 2, kind: input, shape index: {}]
  %s3 = inlined_call_operand.vmem [shape: f32[32,32], index: 3, kind: input, shape index: {}]
  %s4 = inlined_call_operand.vmem [shape: f32[32,64], index: 4, kind: input, shape index: {}]
  %s5 = inlined_call_operand.vmem [shape: f32[32,32], index: 5, kind: input, shape index: {}]
  %s6 = inlined_call_operand.vmem [shape: f32[32,64], index: 6, kind: input, shape index: {}]
  %s7 = inlined_call_operand.vmem [shape: f32[64,32], index: 7, kind: input, shape index: {}]
  %s8 = inlined_call_operand.hbm [shape: f32[8,32], index: 8, kind: input, shape index: {}]
  %s9 = inlined_call_operand.vmem [shape: f32[1,64], index: 9, kind: input, shape index: {}]
  %s10 = inlined_call_operand.vmem [shape: f32[1,64], index: 10, kind: input, shape index: {}]
  %s11 = inlined_call_operand.hbm [shape: f32[16,32], index: 11, kind: output, shape index: {}]
  %s12 = sld [smem:[#allocation0]]
  $region62: #{tpu_custom_call.1} parent=0
    _
  %s14 = ssub.s32 1, %s12
  %s15 = scalar_select 0, %s14, %s12
  $region1: #{tpu_custom_call.1} parent=0
    #allocation2 [shape = 'u8[8192]{0}', space=vmem, size = 0x2000, scoped, tag = 'input window, operand 1, single buffered']
    #allocation3 [shape = 's32[1]{0}', space=sflag, size = 0x4, scoped, tag = 'scoped memory for tpu_custom_call.1']
    #allocation4 [shape = 's32[1]{0}', space=sflag, size = 0x4, scoped, tag = 'scoped memory for tpu_custom_call.1']
    #allocation5 [shape = 'u8[4096]{0}', space=vmem, size = 0x1000, scoped, tag = 'input window, operand 8, single buffered']
    #allocation6 [shape = 's32[1]{0}', space=sflag, size = 0x4, scoped, tag = 'scoped memory for tpu_custom_call.1']
    #allocation7 [shape = 'u8[8192]{0}', space=vmem, size = 0x2000, scoped, tag = 'output window, operand 0, single buffered']
    %16 = vsyncpa [#allocation3], 0
    %17 = vsyncpa [#allocation6], 0
    %18 = vsyncpa [#allocation4], 0
    // Predicated region
    $region2: #{tpu_custom_call.1} parent=1 // pred_check
      _
    $region3: #{tpu_custom_call.1} parent=1 // pred_check_branch
      %20 = sbr.rel (0) target = $region5
    $region4: #{tpu_custom_call.1} parent=1 // pred_region
      _
    $region5: #{tpu_custom_call.1} parent=1 // pred_fallthru
      _
    // Predicated region
    $region6: #{tpu_custom_call.1} parent=1 // pred_check
      _
    $region7: #{tpu_custom_call.1} parent=1 // pred_check_branch
      %22 = sbr.rel (0) target = $region9
    $region8: #{tpu_custom_call.1} parent=1 // pred_region
      %24 = vsyncadd [#allocation3], 0
      %s25 = sshll.u32 %s1, 4
      %s26 = int_to_ptr.hbm [resolvable:$true] %s25
      %s27 = sshll.u32 [#allocation2], 4
      %s28 = int_to_ptr.vmem [resolvable:$true] %s27
      %33 = dma.hbm_to_vmem [thread:$0]  %s26, 256, %s28, [#allocation3], 128, 128, 8
    $region9: #{tpu_custom_call.1} parent=1 // pred_fallthru
      _
    // Predicated region
    $region10: #{tpu_custom_call.1} parent=1 // pred_check
      _
    $region11: #{tpu_custom_call.1} parent=1 // pred_check_branch
      %35 = sbr.rel (0) target = $region13
    $region12: #{tpu_custom_call.1} parent=1 // pred_region
      _
    $region13: #{tpu_custom_call.1} parent=1 // pred_fallthru
      _
    // Predicated region
    $region14: #{tpu_custom_call.1} parent=1 // pred_check
      _
    $region15: #{tpu_custom_call.1} parent=1 // pred_check_branch
      %37 = sbr.rel (0) target = $region17
    $region16: #{tpu_custom_call.1} parent=1 // pred_region
      _
    $region17: #{tpu_custom_call.1} parent=1 // pred_fallthru
      _
    // Predicated region
    $region18: #{tpu_custom_call.1} parent=1 // pred_check
      _
    $region19: #{tpu_custom_call.1} parent=1 // pred_check_branch
      %39 = sbr.rel (0) target = $region21
    $region20: #{tpu_custom_call.1} parent=1 // pred_region
      _
    $region21: #{tpu_custom_call.1} parent=1 // pred_fallthru
      _
    // Predicated region
    $region22: #{tpu_custom_call.1} parent=1 // pred_check
      _
    $region23: #{tpu_custom_call.1} parent=1 // pred_check_branch
      %41 = sbr.rel (0) target = $region25
    $region24: #{tpu_custom_call.1} parent=1 // pred_region
      _
    $region25: #{tpu_custom_call.1} parent=1 // pred_fallthru
      _
    // Predicated region
    $region26: #{tpu_custom_call.1} parent=1 // pred_check
      _
    $region27: #{tpu_custom_call.1} parent=1 // pred_check_branch
      %43 = sbr.rel (0) target = $region29
    $region28: #{tpu_custom_call.1} parent=1 // pred_region
      _
    $region29: #{tpu_custom_call.1} parent=1 // pred_fallthru
      _
    // Predicated region
    $region30: #{tpu_custom_call.1} parent=1 // pred_check
      _
    $region31: #{tpu_custom_call.1} parent=1 // pred_check_branch
      %45 = sbr.rel (0) target = $region33
    $region32: #{tpu_custom_call.1} parent=1 // pred_region
      _
    $region33: #{tpu_custom_call.1} parent=1 // pred_fallthru
      _
    // Predicated region
    $region34: #{tpu_custom_call.1} parent=1 // pred_check
      _
    $region35: #{tpu_custom_call.1} parent=1 // pred_check_branch
      %47 = sbr.rel (0) target = $region37
    $region36: #{tpu_custom_call.1} parent=1 // pred_region
      %49 = vsyncadd [#allocation6], 0
      %s51 = sshll.u32 %s8, 4
      %s52 = int_to_ptr.hbm [resolvable:$true] %s51
      %s53 = sshll.u32 [#allocation5], 4
      %s54 = int_to_ptr.vmem [resolvable:$true] %s53
      %56 = dma.hbm_to_vmem [thread:$0]  %s52, 128, %s54, [#allocation6]
    $region37: #{tpu_custom_call.1} parent=1 // pred_fallthru
      _
    // Predicated region
    $region38: #{tpu_custom_call.1} parent=1 // pred_check
      _
    $region39: #{tpu_custom_call.1} parent=1 // pred_check_branch
      %58 = sbr.rel (0) target = $region41
    $region40: #{tpu_custom_call.1} parent=1 // pred_region
      _
    $region41: #{tpu_custom_call.1} parent=1 // pred_fallthru
      _
    // Predicated region
    $region42: #{tpu_custom_call.1} parent=1 // pred_check
      _
    $region43: #{tpu_custom_call.1} parent=1 // pred_check_branch
      %60 = sbr.rel (0) target = $region45
    $region44: #{tpu_custom_call.1} parent=1 // pred_region
      _
    $region45: #{tpu_custom_call.1} parent=1 // pred_fallthru
      _
    // Predicated region
    $region46: #{tpu_custom_call.1} parent=1 // pred_check
      _
    $region47: #{tpu_custom_call.1} parent=1 // pred_check_branch
      %62 = sbr.rel (0) target = $region49
    $region48: #{tpu_custom_call.1} parent=1 // pred_region
      %64 = dma.done [#allocation3], 256
    $region49: #{tpu_custom_call.1} parent=1 // pred_fallthru
      _
    // Predicated region
    $region50: #{tpu_custom_call.1} parent=1 // pred_check
      _
    $region51: #{tpu_custom_call.1} parent=1 // pred_check_branch
      %66 = sbr.rel (0) target = $region53
    $region52: #{tpu_custom_call.1} parent=1 // pred_region
      %68 = dma.done [#allocation6], 128
    $region53: #{tpu_custom_call.1} parent=1 // pred_fallthru
      _
    %v69 = vld [vmem:[%s0] sm:$0xff]
    %v70 = vld [vmem:[%s0 + $0x8] sm:$0xff]
    %v71 = vld [vmem:[#allocation2] sm:$0xff]
    %v72 = vld [vmem:[#allocation2 + $0x8] sm:$0xff]
    %v73 = vld [vmem:[#allocation5] sm:$0x1]
    %v74 = vld [vmem:[#allocation5 + $0x1] sm:$0x1]
    %v75 = vld [vmem:[#allocation5 + $0x2] sm:$0x1]
    %v76 = vld [vmem:[#allocation5 + $0x3] sm:$0x1]
    %v77 = vld [vmem:[#allocation5 + $0x4] sm:$0x1]
    %v78 = vld [vmem:[#allocation5 + $0x5] sm:$0x1]
    %v79 = vld [vmem:[#allocation5 + $0x6] sm:$0x1]
    %v80 = vld [vmem:[#allocation5 + $0x7] sm:$0x1]
    %v81 = vld [vmem:[%s2] sm:$0xff]
    %v82 = vld [vmem:[%s2 + $0x8] sm:$0xff]
    %v83 = vld [vmem:[%s2 + $0x10] sm:$0xff]
    %v84 = vld [vmem:[%s2 + $0x18] sm:$0xff]
    %v85 = vld [vmem:[%s2 + $0x20] sm:$0xff]
    %v86 = vld [vmem:[%s2 + $0x28] sm:$0xff]
    %v87 = vperm.slane %v73, 0
    %vm88 = vcmask 392192
    %v90 = vsel %vm88, %v69, 0
    %v93 = vsel %vm88, %v70, 0
    %95 = vmatpush.msra.mxu0 0.0
    %96 = vmatpush.msra.mxu0 0.0
    %97 = vmatpush.msra.mxu0 0.0
    %98 = vmatpush.msra.mxu0 0.0
    %99 = vmatpush.msra.mxu0 0.0
    %100 = vmatpush.msra.mxu0 0.0
    %101 = vmatpush.msra.mxu0 0.0
    %102 = vmatpush.msra.mxu0 0.0
    %103 = vmatpush.msra.mxu0 0.0
    %104 = vmatpush.msra.mxu0 0.0
    %105 = vmatpush.msra.mxu0 %v86
    %106 = vmatpush.msra.mxu0 %v85
    %107 = vmatpush.msra.mxu0 %v84
    %108 = vmatpush.msra.mxu0 %v83
    %109 = vmatpush.msra.mxu0 %v82
    %110 = vmatpush.msra.mxu0 %v81
    %111 = vmatmul.f32.gmra.mxu0 %v90
    %v112 = vpop.f32.mrf.mxu0
    %v113 = vadd.f32 %v87, %v112
    %114 = vmatmul.f32.gmra.mxu0 %v93
    %v115 = vpop.f32.mrf.mxu0
    %v116 = vadd.f32 %v87, %v115
    %117 = vdwg.mxu0
    %v118 = vld [vmem:[%s3] sm:$0xff]
    %v119 = vld [vmem:[%s3 + $0x8] sm:$0xff]
    %v120 = vld [vmem:[%s3 + $0x10] sm:$0xff]
    %v121 = vld [vmem:[%s3 + $0x18] sm:$0xff]
    %v122 = vperm.slane %v74, 0
    %vm123 = vcmask 261120
    %v125 = vsel %vm123, %v113, 0
    %v128 = vsel %vm123, %v116, 0
    %130 = vmatpush.msra.mxu0 0.0
    %131 = vmatpush.msra.mxu0 0.0
    %132 = vmatpush.msra.mxu0 0.0
    %133 = vmatpush.msra.mxu0 0.0
    %134 = vmatpush.msra.mxu0 0.0
    %135 = vmatpush.msra.mxu0 0.0
    %136 = vmatpush.msra.mxu0 0.0
    %137 = vmatpush.msra.mxu0 0.0
    %138 = vmatpush.msra.mxu0 0.0
    %139 = vmatpush.msra.mxu0 0.0
    %140 = vmatpush.msra.mxu0 0.0
    %141 = vmatpush.msra.mxu0 0.0
    %142 = vmatpush.msra.mxu0 %v121
    %143 = vmatpush.msra.mxu0 %v120
    %144 = vmatpush.msra.mxu0 %v119
    %145 = vmatpush.msra.mxu0 %v118
    %146 = vmatmul.f32.gmra.mxu0 %v125
    %v147 = vpop.f32.mrf.mxu0
    %v148 = vadd.f32 %v122, %v147
    %149 = vmatmul.f32.gmra.mxu0 %v128
    %v150 = vpop.f32.mrf.mxu0
    %v151 = vadd.f32 %v122, %v150
    %152 = vdwg.mxu0
    %v153 = vld [vmem:[%s4] sm:$0xff]
    %v154 = vld [vmem:[%s4 + $0x8] sm:$0xff]
    %v155 = vld [vmem:[%s4 + $0x10] sm:$0xff]
    %v156 = vld [vmem:[%s4 + $0x18] sm:$0xff]
    %v157 = vld [vmem:[%s9] sm:$0x1]
    %v159 = vperm.slane %v157, 0
    %v162 = vsel %vm123, %v71, 0
    %v165 = vsel %vm123, %v72, 0
    %167 = vmatpush.msra.mxu0 0.0
    %168 = vmatpush.msra.mxu0 0.0
    %169 = vmatpush.msra.mxu0 0.0
    %170 = vmatpush.msra.mxu0 0.0
    %171 = vmatpush.msra.mxu0 0.0
    %172 = vmatpush.msra.mxu0 0.0
    %173 = vmatpush.msra.mxu0 0.0
    %174 = vmatpush.msra.mxu0 0.0
    %175 = vmatpush.msra.mxu0 0.0
    %176 = vmatpush.msra.mxu0 0.0
    %177 = vmatpush.msra.mxu0 0.0
    %178 = vmatpush.msra.mxu0 0.0
    %179 = vmatpush.msra.mxu0 %v156
    %180 = vmatpush.msra.mxu0 %v155
    %181 = vmatpush.msra.mxu0 %v154
    %182 = vmatpush.msra.mxu0 %v153
    %183 = vmatmul.f32.gmra.mxu0 %v162
    %v184 = vpop.f32.mrf.mxu0
    %v185 = vadd.f32 %v159, %v184
    %186 = vmatmul.f32.gmra.mxu0 %v165
    %v187 = vpop.f32.mrf.mxu0
    %v188 = vadd.f32 %v159, %v187
    %189 = vdwg.mxu0
    %v190 = vlaneseq
    %v191 = vshrl.u32 %v190, 7
    %v192 = vadd.s32 %v191, 8
    %vm193 = vcmp.lt.s32.totalorder %v191, 0
    %v194 = vsub.s32 0, %v191
    %v195 = vsel %vm193, %v194, %v191
    %v196 = vshrl.u32 %v195, 1
    %v197 = vand.u32 %v195, 1
    %v198 = vsub.s32 0, %v197
    %v199 = vsel %vm193, %v198, %v197
    %vm200 = vcmp.lt.s32.totalorder %v192, 0
    %v201 = vsub.s32 0, %v192
    %v202 = vsel %vm200, %v201, %v192
    %v203 = vshrl.u32 %v202, 1
    %v204 = vand.u32 %v202, 1
    %v205 = vsub.s32 0, %v204
    %v206 = vsel %vm200, %v205, %v204
    %vm207 = vcmp.ne.s32.totalorder %v199, 0
    %vm208 = vcmp.ne.s32.totalorder %v206, 0
    %vm209 = vcmp.lt.s32.totalorder %v199, 0
    %vm210 = vcmp.lt.s32.totalorder %v206, 0
    %vm211 = vmand %vm209, %vm207
    %vm212 = vmand %vm210, %vm208
    %v213 = vadd.s32 %v199, 2
    %v214 = vadd.s32 %v206, 2
    %v215 = vsel %vm211, %v213, %v199
    %v216 = vsel %vm212, %v214, %v206
    %v217 = vlaneseq
    %v218 = vand.u32 %v217, 127
    %vm219 = vcmp.lt.s32.totalorder %v218, 0
    %v220 = vsub.s32 0, %v218
    %v221 = vsel %vm219, %v220, %v218
    %v222 = vshrl.u32 %v221, 1
    %v223 = vand.u32 %v221, 1
    %v224 = vsub.s32 0, %v223
    %v225 = vsel %vm219, %v224, %v223
    %vm226 = vcmp.ne.s32.totalorder %v225, 0
    %vm227 = vcmp.lt.s32.totalorder %v225, 0
    %vm228 = vmand %vm227, %vm226
    %v229 = vadd.s32 %v225, 2
    %v230 = vsel %vm228, %v229, %v225
    %vm231 = vcmp.eq.s32.totalorder %v215, %v230
    %vm232 = vcmp.eq.s32.totalorder %v216, %v230
    %vm233 = vcmp.ge.s32.totalorder %v218, 0
    %vm234 = vcmp.lt.s32.totalorder %v218, 8
    %vm235 = vmand %vm233, %vm234
    %v236 = vsel %vm235, 1, 0
    %v237 = vcvt.s32.f32 %v236
    %v238 = vmul.f32 %v148, %v237
    %v239 = vmul.f32 %v151, %v237
    %v241 = vsel %vm123, %v238, 0
    %v244 = vsel %vm123, %v239, 0
    %v247 = vsel %vm123, %v185, 0
    %v250 = vsel %vm123, %v188, 0
    %252 = vmatpush.xpose.msra.mxu0 0.0
    %253 = vmatpush.xpose.msra.mxu0 0.0
    %254 = vmatpush.xpose.msra.mxu0 0.0
    %255 = vmatpush.xpose.msra.mxu0 0.0
    %256 = vmatpush.xpose.msra.mxu0 0.0
    %257 = vmatpush.xpose.msra.mxu0 0.0
    %258 = vmatpush.xpose.msra.mxu0 0.0
    %259 = vmatpush.xpose.msra.mxu0 0.0
    %260 = vmatpush.xpose.msra.mxu0 0.0
    %261 = vmatpush.xpose.msra.mxu0 0.0
    %262 = vmatpush.xpose.msra.mxu0 0.0
    %263 = vmatpush.xpose.msra.mxu0 0.0
    %264 = vmatpush.xpose.msra.mxu0 0.0
    %265 = vmatpush.xpose.msra.mxu0 0.0
    %266 = vmatpush.xpose.msra.mxu0 %v250
    %267 = vmatpush.xpose.msra.mxu0 %v247
    %268 = vmatmul.f32.gmra.mxu0 %v241
    %v269 = vpop.f32.mrf.mxu0
    %v270 = vadd.f32 0.0, %v269
    %271 = vmatmul.f32.gmra.mxu0 %v244
    %v272 = vpop.f32.mrf.mxu0
    %v273 = vadd.f32 0.0, %v272
    %274 = vdwg.mxu0
    %v275 = vsel %vm231, %v270, -1e+30
    %v276 = vsel %vm232, %v273, -1e+30
    %vm277 = vcmask 130048
    %v278 = vsel %vm277, %v275, -inf
    %279 = vmax.xlane.f32.xlu0 %v278
    %v280 = vpop.xlane.xlu0 %279
    %v281 = vsel %vm277, %v276, -inf
    %282 = vmax.xlane.f32.xlu0 %v281
    %v283 = vpop.xlane.xlu0 %282
    %v284 = vsub.f32 %v275, %v280
    %v285 = vsub.f32 %v276, %v283
    %v286 = vmul.f32 %v284, 1.442695
    %v287 = vpow.pop %v286
    %v288 = vmul.f32 %v285, 1.442695
    %v289 = vpow.pop %v288
    %v290 = vsel %vm277, %v287, 0.0
    %291 = vadd.xlane.f32.xlu0 %v290
    %v292 = vpop.xlane.xlu0 %291
    %v293 = vsel %vm277, %v289, 0.0
    %294 = vadd.xlane.f32.xlu0 %v293
    %v295 = vpop.xlane.xlu0 %294
    %v296 = vrcp.pop %v292
    %v297 = vrcp.pop %v295
    %v298 = vmul.f32 %v287, %v296
    %v299 = vmul.f32 %v289, %v297
    %301 = vrot.lane.b32.xlu0 %v237, 32
    %v302 = vpop.permute.xlu0 %301
    %v304 = vmul.f32 %v185, %v302
    %v305 = vmul.f32 %v188, %v302
    %vm306 = vcmp.ge.s32.totalorder %v218, 8
    %vm307 = vcmp.lt.s32.totalorder %v218, 16
    %vm308 = vmand %vm306, %vm307
    %v309 = vsel %vm308, 1, 0
    %v310 = vcvt.s32.f32 %v309
    %v311 = vmul.f32 %v148, %v310
    %v312 = vmul.f32 %v151, %v310
    %v314 = vsel %vm123, %v311, 0
    %v317 = vsel %vm123, %v312, 0
    %319 = vmatpush.xpose.msra.mxu0 0.0
    %320 = vmatpush.xpose.msra.mxu0 0.0
    %321 = vmatpush.xpose.msra.mxu0 0.0
    %322 = vmatpush.xpose.msra.mxu0 0.0
    %323 = vmatpush.xpose.msra.mxu0 0.0
    %324 = vmatpush.xpose.msra.mxu0 0.0
    %325 = vmatpush.xpose.msra.mxu0 0.0
    %326 = vmatpush.xpose.msra.mxu0 0.0
    %327 = vmatpush.xpose.msra.mxu0 0.0
    %328 = vmatpush.xpose.msra.mxu0 0.0
    %329 = vmatpush.xpose.msra.mxu0 0.0
    %330 = vmatpush.xpose.msra.mxu0 0.0
    %331 = vmatpush.xpose.msra.mxu0 0.0
    %332 = vmatpush.xpose.msra.mxu0 0.0
    %333 = vmatpush.xpose.msra.mxu0 %v250
    %334 = vmatpush.xpose.msra.mxu0 %v247
    %335 = vmatmul.f32.gmra.mxu0 %v314
    %v336 = vpop.f32.mrf.mxu0
    %v337 = vadd.f32 0.0, %v336
    %338 = vmatmul.f32.gmra.mxu0 %v317
    %v339 = vpop.f32.mrf.mxu0
    %v340 = vadd.f32 0.0, %v339
    %341 = vdwg.mxu0
    %v342 = vsel %vm231, %v337, -1e+30
    %v343 = vsel %vm232, %v340, -1e+30
    %v344 = vsel %vm277, %v342, -inf
    %345 = vmax.xlane.f32.xlu0 %v344
    %v346 = vpop.xlane.xlu0 %345
    %v347 = vsel %vm277, %v343, -inf
    %348 = vmax.xlane.f32.xlu0 %v347
    %v349 = vpop.xlane.xlu0 %348
    %v350 = vsub.f32 %v342, %v346
    %v351 = vsub.f32 %v343, %v349
    %v352 = vmul.f32 %v350, 1.442695
    %v353 = vpow.pop %v352
    %v354 = vmul.f32 %v351, 1.442695
    %v355 = vpow.pop %v354
    %v356 = vsel %vm277, %v353, 0.0
    %357 = vadd.xlane.f32.xlu0 %v356
    %v358 = vpop.xlane.xlu0 %357
    %v359 = vsel %vm277, %v355, 0.0
    %360 = vadd.xlane.f32.xlu0 %v359
    %v361 = vpop.xlane.xlu0 %360
    %v362 = vrcp.pop %v358
    %v363 = vrcp.pop %v361
    %v364 = vmul.f32 %v353, %v362
    %v365 = vmul.f32 %v355, %v363
    %367 = vrot.lane.b32.xlu0 %v310, 32
    %v368 = vpop.permute.xlu0 %367
    %v370 = vmul.f32 %v185, %v368
    %v371 = vmul.f32 %v188, %v368
    %374 = vrot.lane.b32.xlu0 %v370, 96
    %v375 = vpop.permute.xlu0 %374
    %376 = vrot.lane.b32.xlu0 %v371, 96
    %v377 = vpop.permute.xlu0 %376
    %v381 = vsel %vm277, %v364, 0
    %v384 = vsel %vm277, %v365, 0
    %386 = vmatpush.msra.mxu0 0.0
    %387 = vmatpush.msra.mxu0 0.0
    %388 = vmatpush.msra.mxu0 0.0
    %389 = vmatpush.msra.mxu0 0.0
    %390 = vmatpush.msra.mxu0 0.0
    %391 = vmatpush.msra.mxu0 0.0
    %392 = vmatpush.msra.mxu0 0.0
    %393 = vmatpush.msra.mxu0 0.0
    %394 = vmatpush.msra.mxu0 0.0
    %395 = vmatpush.msra.mxu0 0.0
    %396 = vmatpush.msra.mxu0 0.0
    %397 = vmatpush.msra.mxu0 0.0
    %398 = vmatpush.msra.mxu0 0.0
    %399 = vmatpush.msra.mxu0 0.0
    %400 = vmatpush.msra.mxu0 %v377
    %401 = vmatpush.msra.mxu0 %v375
    %402 = vmatmul.f32.gmra.mxu0 %v381
    %v403 = vpop.f32.mrf.mxu0
    %v404 = vadd.f32 0.0, %v403
    %405 = vmatmul.f32.gmra.mxu0 %v384
    %v406 = vpop.f32.mrf.mxu0
    %v407 = vadd.f32 0.0, %v406
    %408 = vdwg.mxu0
    %411 = vrot.lane.b32.xlu0 %v304, 96
    %v412 = vpop.permute.xlu0 %411
    %413 = vrot.lane.b32.xlu0 %v305, 96
    %v414 = vpop.permute.xlu0 %413
    %v418 = vsel %vm277, %v298, 0
    %v421 = vsel %vm277, %v299, 0
    %423 = vmatpush.msra.mxu0 0.0
    %424 = vmatpush.msra.mxu0 0.0
    %425 = vmatpush.msra.mxu0 0.0
    %426 = vmatpush.msra.mxu0 0.0
    %427 = vmatpush.msra.mxu0 0.0
    %428 = vmatpush.msra.mxu0 0.0
    %429 = vmatpush.msra.mxu0 0.0
    %430 = vmatpush.msra.mxu0 0.0
    %431 = vmatpush.msra.mxu0 0.0
    %432 = vmatpush.msra.mxu0 0.0
    %433 = vmatpush.msra.mxu0 0.0
    %434 = vmatpush.msra.mxu0 0.0
    %435 = vmatpush.msra.mxu0 0.0
    %436 = vmatpush.msra.mxu0 0.0
    %437 = vmatpush.msra.mxu0 %v414
    %438 = vmatpush.msra.mxu0 %v412
    %439 = vmatmul.f32.gmra.mxu0 %v418
    %v440 = vpop.f32.mrf.mxu0
    %v441 = vadd.f32 %v404, %v440
    %442 = vmatmul.f32.gmra.mxu0 %v421
    %v443 = vpop.f32.mrf.mxu0
    %v444 = vadd.f32 %v407, %v443
    %445 = vdwg.mxu0
    %vm446 = vcmp.ge.s32.totalorder %v218, 16
    %vm447 = vcmp.lt.s32.totalorder %v218, 24
    %vm448 = vmand %vm446, %vm447
    %v449 = vsel %vm448, 1, 0
    %v450 = vcvt.s32.f32 %v449
    %v451 = vmul.f32 %v148, %v450
    %v452 = vmul.f32 %v151, %v450
    %v454 = vsel %vm123, %v451, 0
    %v457 = vsel %vm123, %v452, 0
    %459 = vmatpush.xpose.msra.mxu0 0.0
    %460 = vmatpush.xpose.msra.mxu0 0.0
    %461 = vmatpush.xpose.msra.mxu0 0.0
    %462 = vmatpush.xpose.msra.mxu0 0.0
    %463 = vmatpush.xpose.msra.mxu0 0.0
    %464 = vmatpush.xpose.msra.mxu0 0.0
    %465 = vmatpush.xpose.msra.mxu0 0.0
    %466 = vmatpush.xpose.msra.mxu0 0.0
    %467 = vmatpush.xpose.msra.mxu0 0.0
    %468 = vmatpush.xpose.msra.mxu0 0.0
    %469 = vmatpush.xpose.msra.mxu0 0.0
    %470 = vmatpush.xpose.msra.mxu0 0.0
    %471 = vmatpush.xpose.msra.mxu0 0.0
    %472 = vmatpush.xpose.msra.mxu0 0.0
    %473 = vmatpush.xpose.msra.mxu0 %v250
    %474 = vmatpush.xpose.msra.mxu0 %v247
    %475 = vmatmul.f32.gmra.mxu0 %v454
    %v476 = vpop.f32.mrf.mxu0
    %v477 = vadd.f32 0.0, %v476
    %478 = vmatmul.f32.gmra.mxu0 %v457
    %v479 = vpop.f32.mrf.mxu0
    %v480 = vadd.f32 0.0, %v479
    %481 = vdwg.mxu0
    %v482 = vsel %vm231, %v477, -1e+30
    %v483 = vsel %vm232, %v480, -1e+30
    %v484 = vsel %vm277, %v482, -inf
    %485 = vmax.xlane.f32.xlu0 %v484
    %v486 = vpop.xlane.xlu0 %485
    %v487 = vsel %vm277, %v483, -inf
    %488 = vmax.xlane.f32.xlu0 %v487
    %v489 = vpop.xlane.xlu0 %488
    %v490 = vsub.f32 %v482, %v486
    %v491 = vsub.f32 %v483, %v489
    %v492 = vmul.f32 %v490, 1.442695
    %v493 = vpow.pop %v492
    %v494 = vmul.f32 %v491, 1.442695
    %v495 = vpow.pop %v494
    %v496 = vsel %vm277, %v493, 0.0
    %497 = vadd.xlane.f32.xlu0 %v496
    %v498 = vpop.xlane.xlu0 %497
    %v499 = vsel %vm277, %v495, 0.0
    %500 = vadd.xlane.f32.xlu0 %v499
    %v501 = vpop.xlane.xlu0 %500
    %v502 = vrcp.pop %v498
    %v503 = vrcp.pop %v501
    %v504 = vmul.f32 %v493, %v502
    %v505 = vmul.f32 %v495, %v503
    %507 = vrot.lane.b32.xlu0 %v450, 32
    %v508 = vpop.permute.xlu0 %507
    %v510 = vmul.f32 %v185, %v508
    %v511 = vmul.f32 %v188, %v508
    %514 = vrot.lane.b32.xlu0 %v510, 96
    %v515 = vpop.permute.xlu0 %514
    %516 = vrot.lane.b32.xlu0 %v511, 96
    %v517 = vpop.permute.xlu0 %516
    %v521 = vsel %vm277, %v504, 0
    %v524 = vsel %vm277, %v505, 0
    %526 = vmatpush.msra.mxu0 0.0
    %527 = vmatpush.msra.mxu0 0.0
    %528 = vmatpush.msra.mxu0 0.0
    %529 = vmatpush.msra.mxu0 0.0
    %530 = vmatpush.msra.mxu0 0.0
    %531 = vmatpush.msra.mxu0 0.0
    %532 = vmatpush.msra.mxu0 0.0
    %533 = vmatpush.msra.mxu0 0.0
    %534 = vmatpush.msra.mxu0 0.0
    %535 = vmatpush.msra.mxu0 0.0
    %536 = vmatpush.msra.mxu0 0.0
    %537 = vmatpush.msra.mxu0 0.0
    %538 = vmatpush.msra.mxu0 0.0
    %539 = vmatpush.msra.mxu0 0.0
    %540 = vmatpush.msra.mxu0 %v517
    %541 = vmatpush.msra.mxu0 %v515
    %542 = vmatmul.f32.gmra.mxu0 %v521
    %v543 = vpop.f32.mrf.mxu0
    %v544 = vadd.f32 0.0, %v543
    %545 = vmatmul.f32.gmra.mxu0 %v524
    %v546 = vpop.f32.mrf.mxu0
    %v547 = vadd.f32 0.0, %v546
    %548 = vdwg.mxu0
    %v549 = vadd.f32 %v441, %v544
    %v550 = vadd.f32 %v444, %v547
    %vm551 = vcmp.ge.s32.totalorder %v218, 24
    %vm552 = vcmp.lt.s32.totalorder %v218, 32
    %vm553 = vmand %vm551, %vm552
    %v554 = vsel %vm553, 1, 0
    %v555 = vcvt.s32.f32 %v554
    %v556 = vmul.f32 %v148, %v555
    %v557 = vmul.f32 %v151, %v555
    %v559 = vsel %vm123, %v556, 0
    %v562 = vsel %vm123, %v557, 0
    %564 = vmatpush.xpose.msra.mxu0 0.0
    %565 = vmatpush.xpose.msra.mxu0 0.0
    %566 = vmatpush.xpose.msra.mxu0 0.0
    %567 = vmatpush.xpose.msra.mxu0 0.0
    %568 = vmatpush.xpose.msra.mxu0 0.0
    %569 = vmatpush.xpose.msra.mxu0 0.0
    %570 = vmatpush.xpose.msra.mxu0 0.0
    %571 = vmatpush.xpose.msra.mxu0 0.0
    %572 = vmatpush.xpose.msra.mxu0 0.0
    %573 = vmatpush.xpose.msra.mxu0 0.0
    %574 = vmatpush.xpose.msra.mxu0 0.0
    %575 = vmatpush.xpose.msra.mxu0 0.0
    %576 = vmatpush.xpose.msra.mxu0 0.0
    %577 = vmatpush.xpose.msra.mxu0 0.0
    %578 = vmatpush.xpose.msra.mxu0 %v250
    %579 = vmatpush.xpose.msra.mxu0 %v247
    %580 = vmatmul.f32.gmra.mxu0 %v559
    %v581 = vpop.f32.mrf.mxu0
    %v582 = vadd.f32 0.0, %v581
    %583 = vmatmul.f32.gmra.mxu0 %v562
    %v584 = vpop.f32.mrf.mxu0
    %v585 = vadd.f32 0.0, %v584
    %586 = vdwg.mxu0
    %v587 = vsel %vm231, %v582, -1e+30
    %v588 = vsel %vm232, %v585, -1e+30
    %v589 = vsel %vm277, %v587, -inf
    %590 = vmax.xlane.f32.xlu0 %v589
    %v591 = vpop.xlane.xlu0 %590
    %v592 = vsel %vm277, %v588, -inf
    %593 = vmax.xlane.f32.xlu0 %v592
    %v594 = vpop.xlane.xlu0 %593
    %v595 = vsub.f32 %v587, %v591
    %v596 = vsub.f32 %v588, %v594
    %v597 = vmul.f32 %v595, 1.442695
    %v598 = vpow.pop %v597
    %v599 = vmul.f32 %v596, 1.442695
    %v600 = vpow.pop %v599
    %v601 = vsel %vm277, %v598, 0.0
    %602 = vadd.xlane.f32.xlu0 %v601
    %v603 = vpop.xlane.xlu0 %602
    %v604 = vsel %vm277, %v600, 0.0
    %605 = vadd.xlane.f32.xlu0 %v604
    %v606 = vpop.xlane.xlu0 %605
    %v607 = vrcp.pop %v603
    %v608 = vrcp.pop %v606
    %v609 = vmul.f32 %v598, %v607
    %v610 = vmul.f32 %v600, %v608
    %612 = vrot.lane.b32.xlu0 %v555, 32
    %v613 = vpop.permute.xlu0 %612
    %v615 = vmul.f32 %v185, %v613
    %v616 = vmul.f32 %v188, %v613
    %619 = vrot.lane.b32.xlu0 %v615, 96
    %v620 = vpop.permute.xlu0 %619
    %621 = vrot.lane.b32.xlu0 %v616, 96
    %v622 = vpop.permute.xlu0 %621
    %v626 = vsel %vm277, %v609, 0
    %v629 = vsel %vm277, %v610, 0
    %631 = vmatpush.msra.mxu0 0.0
    %632 = vmatpush.msra.mxu0 0.0
    %633 = vmatpush.msra.mxu0 0.0
    %634 = vmatpush.msra.mxu0 0.0
    %635 = vmatpush.msra.mxu0 0.0
    %636 = vmatpush.msra.mxu0 0.0
    %637 = vmatpush.msra.mxu0 0.0
    %638 = vmatpush.msra.mxu0 0.0
    %639 = vmatpush.msra.mxu0 0.0
    %640 = vmatpush.msra.mxu0 0.0
    %641 = vmatpush.msra.mxu0 0.0
    %642 = vmatpush.msra.mxu0 0.0
    %643 = vmatpush.msra.mxu0 0.0
    %644 = vmatpush.msra.mxu0 0.0
    %645 = vmatpush.msra.mxu0 %v622
    %646 = vmatpush.msra.mxu0 %v620
    %647 = vmatmul.f32.gmra.mxu0 %v626
    %v648 = vpop.f32.mrf.mxu0
    %v649 = vadd.f32 0.0, %v648
    %650 = vmatmul.f32.gmra.mxu0 %v629
    %v651 = vpop.f32.mrf.mxu0
    %v652 = vadd.f32 0.0, %v651
    %653 = vdwg.mxu0
    %v654 = vadd.f32 %v549, %v649
    %v655 = vadd.f32 %v550, %v652
    %v656 = vld [vmem:[%s5] sm:$0xff]
    %v657 = vld [vmem:[%s5 + $0x8] sm:$0xff]
    %v658 = vld [vmem:[%s5 + $0x10] sm:$0xff]
    %v659 = vld [vmem:[%s5 + $0x18] sm:$0xff]
    %v660 = vperm.slane %v75, 0
    %v662 = vsel %vm123, %v654, 0
    %v665 = vsel %vm123, %v655, 0
    %667 = vmatpush.msra.mxu0 0.0
    %668 = vmatpush.msra.mxu0 0.0
    %669 = vmatpush.msra.mxu0 0.0
    %670 = vmatpush.msra.mxu0 0.0
    %671 = vmatpush.msra.mxu0 0.0
    %672 = vmatpush.msra.mxu0 0.0
    %673 = vmatpush.msra.mxu0 0.0
    %674 = vmatpush.msra.mxu0 0.0
    %675 = vmatpush.msra.mxu0 0.0
    %676 = vmatpush.msra.mxu0 0.0
    %677 = vmatpush.msra.mxu0 0.0
    %678 = vmatpush.msra.mxu0 0.0
    %679 = vmatpush.msra.mxu0 %v659
    %680 = vmatpush.msra.mxu0 %v658
    %681 = vmatpush.msra.mxu0 %v657
    %682 = vmatpush.msra.mxu0 %v656
    %683 = vmatmul.f32.gmra.mxu0 %v662
    %v684 = vpop.f32.mrf.mxu0
    %v685 = vadd.f32 %v660, %v684
    %686 = vmatmul.f32.gmra.mxu0 %v665
    %v687 = vpop.f32.mrf.mxu0
    %v688 = vadd.f32 %v660, %v687
    %689 = vdwg.mxu0
    %v690 = vadd.f32 %v113, %v685
    %v691 = vadd.f32 %v116, %v688
    %v692 = vsel %vm123, %v690, 0.0
    %693 = vadd.xlane.f32.xlu0 %v692
    %v694 = vpop.xlane.xlu0 %693
    %v695 = vsel %vm123, %v691, 0.0
    %696 = vadd.xlane.f32.xlu0 %v695
    %v697 = vpop.xlane.xlu0 %696
    %v698 = vrcp.pop 32.0
    %v699 = vmul.f32 32.0, %v698
    %v700 = vsub.f32 1.0, %v699
    %v701 = vmul.f32 %v698, %v700
    %v702 = vadd.f32 %v698, %v701
    %vm703 = vweird.f32 %v698
    %v704 = vsel %vm703, %v698, %v702
    %v705 = vmul.f32 %v694, %v704
    %v706 = vmul.f32 %v697, %v704
    %v707 = vsub.f32 %v690, %v705
    %v708 = vsub.f32 %v691, %v706
    %v709 = vmul.f32 %v707, %v707
    %v710 = vmul.f32 %v708, %v708
    %v711 = vsel %vm123, %v709, 0.0
    %712 = vadd.xlane.f32.xlu0 %v711
    %v713 = vpop.xlane.xlu0 %712
    %v714 = vsel %vm123, %v710, 0.0
    %715 = vadd.xlane.f32.xlu0 %v714
    %v716 = vpop.xlane.xlu0 %715
    %v717 = vmul.f32 %v713, %v704
    %v718 = vmul.f32 %v716, %v704
    %v719 = vadd.f32 %v717, 1e-05
    %v720 = vadd.f32 %v718, 1e-05
    %v721 = vrsqrt.pop %v719
    %v722 = vmul.f32 %v721, %v719
    %v723 = vmul.f32 %v722, %v721
    %v724 = vmul.f32 0.5, %v723
    %v725 = vsub.f32 1.5, %v724
    %v726 = vmul.f32 %v721, %v725
    %vm727 = vweird.f32 %v719
    %vm728 = vweird.f32 %v721
    %vm729 = vmor %vm727, %vm728
    %v730 = vsel %vm729, %v721, %v726
    %v731 = vrsqrt.pop %v720
    %v732 = vmul.f32 %v731, %v720
    %v733 = vmul.f32 %v732, %v731
    %v734 = vmul.f32 0.5, %v733
    %v735 = vsub.f32 1.5, %v734
    %v736 = vmul.f32 %v731, %v735
    %vm737 = vweird.f32 %v720
    %vm738 = vweird.f32 %v731
    %vm739 = vmor %vm737, %vm738
    %v740 = vsel %vm739, %v731, %v736
    %v741 = vmul.f32 %v707, %v730
    %v742 = vmul.f32 %v708, %v740
    %v743 = vperm.slane %v76, 0
    %v744 = vmul.f32 %v741, %v743
    %v745 = vmul.f32 %v742, %v743
    %v746 = vperm.slane %v77, 0
    %v747 = vadd.f32 %v744, %v746
    %v748 = vadd.f32 %v745, %v746
    %v749 = vld [vmem:[%s6] sm:$0xff]
    %v750 = vld [vmem:[%s6 + $0x8] sm:$0xff]
    %v751 = vld [vmem:[%s6 + $0x10] sm:$0xff]
    %v752 = vld [vmem:[%s6 + $0x18] sm:$0xff]
    %v753 = vld [vmem:[%s10] sm:$0x1]
    %v755 = vperm.slane %v753, 0
    %v758 = vsel %vm123, %v747, 0
    %v761 = vsel %vm123, %v748, 0
    %763 = vmatpush.msra.mxu0 0.0
    %764 = vmatpush.msra.mxu0 0.0
    %765 = vmatpush.msra.mxu0 0.0
    %766 = vmatpush.msra.mxu0 0.0
    %767 = vmatpush.msra.mxu0 0.0
    %768 = vmatpush.msra.mxu0 0.0
    %769 = vmatpush.msra.mxu0 0.0
    %770 = vmatpush.msra.mxu0 0.0
    %771 = vmatpush.msra.mxu0 0.0
    %772 = vmatpush.msra.mxu0 0.0
    %773 = vmatpush.msra.mxu0 0.0
    %774 = vmatpush.msra.mxu0 0.0
    %775 = vmatpush.msra.mxu0 %v752
    %776 = vmatpush.msra.mxu0 %v751
    %777 = vmatpush.msra.mxu0 %v750
    %778 = vmatpush.msra.mxu0 %v749
    %779 = vmatmul.f32.gmra.mxu0 %v758
    %v780 = vpop.f32.mrf.mxu0
    %v781 = vadd.f32 %v755, %v780
    %782 = vmatmul.f32.gmra.mxu0 %v761
    %v783 = vpop.f32.mrf.mxu0
    %v784 = vadd.f32 %v755, %v783
    %785 = vdwg.mxu0
    %v786 = vmax.f32 %v781, 0.0
    %v787 = vmax.f32 %v784, 0.0
    %v788 = vld [vmem:[%s7] sm:$0xff]
    %v789 = vld [vmem:[%s7 + $0x8] sm:$0xff]
    %v790 = vld [vmem:[%s7 + $0x10] sm:$0xff]
    %v791 = vld [vmem:[%s7 + $0x18] sm:$0xff]
    %v792 = vld [vmem:[%s7 + $0x20] sm:$0xff]
    %v793 = vld [vmem:[%s7 + $0x28] sm:$0xff]
    %v794 = vld [vmem:[%s7 + $0x30] sm:$0xff]
    %v795 = vld [vmem:[%s7 + $0x38] sm:$0xff]
    %v796 = vperm.slane %v78, 0
    %vm797 = vcmask 523264
    %v799 = vsel %vm797, %v786, 0
    %v802 = vsel %vm797, %v787, 0
    %804 = vmatpush.msra.mxu0 0.0
    %805 = vmatpush.msra.mxu0 0.0
    %806 = vmatpush.msra.mxu0 0.0
    %807 = vmatpush.msra.mxu0 0.0
    %808 = vmatpush.msra.mxu0 0.0
    %809 = vmatpush.msra.mxu0 0.0
    %810 = vmatpush.msra.mxu0 0.0
    %811 = vmatpush.msra.mxu0 0.0
    %812 = vmatpush.msra.mxu0 %v795
    %813 = vmatpush.msra.mxu0 %v794
    %814 = vmatpush.msra.mxu0 %v793
    %815 = vmatpush.msra.mxu0 %v792
    %816 = vmatpush.msra.mxu0 %v791
    %817 = vmatpush.msra.mxu0 %v790
    %818 = vmatpush.msra.mxu0 %v789
    %819 = vmatpush.msra.mxu0 %v788
    %820 = vmatmul.f32.gmra.mxu0 %v799
    %v821 = vpop.f32.mrf.mxu0
    %v822 = vadd.f32 %v796, %v821
    %823 = vmatmul.f32.gmra.mxu0 %v802
    %v824 = vpop.f32.mrf.mxu0
    %v825 = vadd.f32 %v796, %v824
    %826 = vdwg.mxu0
    %v827 = vadd.f32 %v747, %v822
    %v828 = vadd.f32 %v748, %v825
    %v829 = vsel %vm123, %v827, 0.0
    %830 = vadd.xlane.f32.xlu0 %v829
    %v831 = vpop.xlane.xlu0 %830
    %v832 = vsel %vm123, %v828, 0.0
    %833 = vadd.xlane.f32.xlu0 %v832
    %v834 = vpop.xlane.xlu0 %833
    %v835 = vmul.f32 %v831, %v704
    %v836 = vmul.f32 %v834, %v704
    %v837 = vsub.f32 %v827, %v835
    %v838 = vsub.f32 %v828, %v836
    %v839 = vmul.f32 %v837, %v837
    %v840 = vmul.f32 %v838, %v838
    %v841 = vsel %vm123, %v839, 0.0
    %842 = vadd.xlane.f32.xlu0 %v841
    %v843 = vpop.xlane.xlu0 %842
    %v844 = vsel %vm123, %v840, 0.0
    %845 = vadd.xlane.f32.xlu0 %v844
    %v846 = vpop.xlane.xlu0 %845
    %v847 = vmul.f32 %v843, %v704
    %v848 = vmul.f32 %v846, %v704
    %v849 = vadd.f32 %v847, 1e-05
    %v850 = vadd.f32 %v848, 1e-05
    %v851 = vrsqrt.pop %v849
    %v852 = vmul.f32 %v851, %v849
    %v853 = vmul.f32 %v852, %v851
    %v854 = vmul.f32 0.5, %v853
    %v855 = vsub.f32 1.5, %v854
    %v856 = vmul.f32 %v851, %v855
    %vm857 = vweird.f32 %v849
    %vm858 = vweird.f32 %v851
    %vm859 = vmor %vm857, %vm858
    %v860 = vsel %vm859, %v851, %v856
    %v861 = vrsqrt.pop %v850
    %v862 = vmul.f32 %v861, %v850
    %v863 = vmul.f32 %v862, %v861
    %v864 = vmul.f32 0.5, %v863
    %v865 = vsub.f32 1.5, %v864
    %v866 = vmul.f32 %v861, %v865
    %vm867 = vweird.f32 %v850
    %vm868 = vweird.f32 %v861
    %vm869 = vmor %vm867, %vm868
    %v870 = vsel %vm869, %v861, %v866
    %v871 = vmul.f32 %v837, %v860
    %v872 = vmul.f32 %v838, %v870
    %v873 = vperm.slane %v79, 0
    %v874 = vmul.f32 %v871, %v873
    %v875 = vmul.f32 %v872, %v873
    %v876 = vperm.slane %v80, 0
    %v877 = vadd.f32 %v874, %v876
    %v878 = vadd.f32 %v875, %v876
    %879 = vst.msk [vmem:[#allocation7] sm:$0xff] %vm123, %v877
    %880 = vst.msk [vmem:[#allocation7 + $0x8] sm:$0xff] %vm123, %v878
    // Predicated region
    $region54: #{tpu_custom_call.1} parent=1 // pred_check
      _
    $region55: #{tpu_custom_call.1} parent=1 // pred_check_branch
      %882 = sbr.rel (0) target = $region57
    $region56: #{tpu_custom_call.1} parent=1 // pred_region
      %884 = vsyncadd [#allocation4], 0
      %s885 = sshll.u32 [#allocation7], 4
      %s886 = int_to_ptr.vmem [resolvable:$true] %s885
      %s887 = sshll.u32 %s11, 4
      %s888 = int_to_ptr.hbm [resolvable:$true] %s887
      %893 = dma.vmem_to_hbm [thread:$0]  %s886, 256, %s888, [#allocation4], 128, 128, 8
    $region57: #{tpu_custom_call.1} parent=1 // pred_fallthru
      _
    // Predicated region
    $region58: #{tpu_custom_call.1} parent=1 // pred_check
      _
    $region59: #{tpu_custom_call.1} parent=1 // pred_check_branch
      %895 = sbr.rel (0) target = $region61
    $region60: #{tpu_custom_call.1} parent=1 // pred_region
      %897 = dma.done [#allocation4], 256
    $region61: #{tpu_custom_call.1} parent=1 // pred_fallthru
      _
    %898 = vsyncpa [#allocation3], 1
    %899 = vsyncpa [#allocation6], 1
    %900 = vsyncpa [#allocation4], 1

</llo_original>
